<compile_context>
chip_gen: v5e
topology: v5e:2x2
jax: 0.10.0
libtpu: 0.0.40
codegen_flags: <defaults>
</compile_context>

<pallas_src>
import functools
import math

import jax
import jax.numpy as jnp
from jax.experimental import pallas as pl
from jax.experimental.pallas import tpu as pltpu

LANES = 128


def _round_down(a: int, b: int) -> int:
    return (a // b) * b


def _tpu_config():
    """Return (hw_core_count, dma_block_bytes, scoped_vmem_limit_bytes)."""
    kind = ""
    try:
        kind = jax.devices()[0].device_kind.lower()
    except Exception:  # pragma: no cover - defensive; fall back to defaults
        pass
    vmem_phys = 128 << 20
    try:
        vmem_phys = int(pltpu.get_tpu_info().vmem_capacity_bytes)
    except Exception:  # pragma: no cover - defensive; fall back to defaults
        pass

    is_v7 = ("v7" in kind) or ("7x" in kind)
    big_hbm = is_v7 or ("v6" in kind) or ("trillium" in kind)
    ncores_hw = 2 if is_v7 else 1
    # 8 MiB DMA blocks on v6e/v7x (hide the ~0.35 us per-step overhead against
    # fast HBM), 4 MiB on v5e / unknown so the double-buffered pipeline stays
    # inside the 16 MiB default scoped VMEM even before raising the limit.
    block_bytes = (8 << 20) if big_hbm else (4 << 20)
    # Headroom: 2 double-buffered input blocks + f32 upcast temporaries.
    vmem_limit = min(3 * vmem_phys // 4, 6 * block_bytes + (4 << 20))
    return ncores_hw, block_bytes, vmem_limit


def _sum_kernel(x_ref, o_ref, *, tile_rows, acc_rows, rows, tiles_per_core,
                num_tiles, needs_mask):
    """Accumulate per-lane partial sums of x into a resident (acc_rows, 128) block.

    x_ref: (tile_rows, 128) tile of the flattened input.
    o_ref: (1, acc_rows, 128) f32 per-core accumulator, resident across the
           'arbitrary' reduction axis.
    """
    t = pl.program_id(1)   # reduction step (arbitrary)

    @pl.when(t == 0)
    def _init():
        o_ref[...] = jnp.zeros_like(o_ref)

    def fold(x):
        # Fold slabs of acc_rows rows into the accumulator: plain element-wise
        # VPU adds into several independent (8,128)-vreg chains, no XLU reduce.
        o_ref[0] += jnp.sum(
            x.reshape(tile_rows // acc_rows, acc_rows, LANES), axis=0)

    if not needs_mask:
        fold(x_ref[...].astype(jnp.float32))
        return

    blk = pl.program_id(0) * tiles_per_core + t
    # Only the true tail block and any over-assigned (clamped) duplicate
    # blocks need masking; every other block takes the plain fast path.
    is_tail = blk >= num_tiles - 1

    @pl.when(jnp.logical_not(is_tail))
    def _fast():
        fold(x_ref[...].astype(jnp.float32))

    @pl.when(is_tail)
    def _masked():
        # NOTE: keep the mask BEFORE any arithmetic — rows past `valid` hold
        # undefined DMA edge padding. `valid` <= 0 for over-assigned duplicate
        # blocks so they contribute exactly zero.
        valid = rows - blk * tile_rows
        row_ids = jax.lax.broadcasted_iota(jnp.int32, (tile_rows, LANES), 0)
        fold(jnp.where(row_ids < valid, x_ref[...].astype(jnp.float32), 0.0))


def occ_reg(x, invert: bool = False):
    """Pallas equivalent of OccReg.forward.

    :param x: arbitrary-shape array of sigmoid disparities.
    :param invert: if True, encourage foreground disparities (negate).
    :return: (loss, {}) — scalar f32 loss and an empty loss dict.
    """
    sign = -1.0 if invert else 1.0
    n = x.size
    x_flat = jnp.ravel(x)

    itemsize = jnp.dtype(x.dtype).itemsize
    sublane = max(8, 32 // max(1, itemsize))   # 8 f32, 16 bf16, 32 int8/fp8

    rows = n // LANES
    total = jnp.float32(0.0)
    n_main = 0

    if rows >= sublane:
        ncores_hw, block_bytes, vmem_limit = _tpu_config()

        n_main = rows * LANES
        if n_main == n:
            x2d = x_flat.reshape(rows, LANES)            # zero-copy reshape
        else:
            # TODO(synk): fold the <128-element tail into the kernel so ragged
            # sizes avoid a potential prefix-slice copy feeding the custom call.
            x2d = x_flat[:n_main].reshape(rows, LANES)

        max_tile_rows = max(
            sublane, _round_down(block_bytes // (LANES * itemsize), sublane))
        tile_rows = min(max_tile_rows, _round_down(rows, sublane))
        num_tiles = pl.cdiv(rows, tile_rows)
        ncores = ncores_hw if num_tiles >= ncores_hw else 1
        tiles_per_core = pl.cdiv(num_tiles, ncores)
        needs_mask = ncores * tiles_per_core * tile_rows > rows
        over_assigned = ncores * tiles_per_core > num_tiles
        last_block = num_tiles - 1
        acc_rows = math.gcd(tile_rows, 64)   # up to 8 independent add chains

        def x_index_map(c, t):
            blk = c * tiles_per_core + t
            if over_assigned:
                # Keep the DMA in bounds; over-assigned blocks are fully
                # masked to zero inside the kernel.
                blk = jnp.minimum(blk, last_block)
            return (blk, 0)

        kernel = functools.partial(
            _sum_kernel,
            tile_rows=tile_rows,
            acc_rows=acc_rows,
            rows=rows,
            tiles_per_core=tiles_per_core,
            num_tiles=num_tiles,
            needs_mask=needs_mask,
        )

        def run(core_sem):
            return pl.pallas_call(
                kernel,
                out_shape=jax.ShapeDtypeStruct((ncores, acc_rows, LANES),
                                               jnp.float32),
                grid_spec=pltpu.PrefetchScalarGridSpec(
                    num_scalar_prefetch=0,
                    grid=(ncores, tiles_per_core),
                    in_specs=[pl.BlockSpec((tile_rows, LANES), x_index_map)],
                    out_specs=pl.BlockSpec((1, acc_rows, LANES),
                                           lambda c, t: (c, 0, 0)),
                ),
                compiler_params=pltpu.CompilerParams(
                    dimension_semantics=(core_sem, pltpu.ARBITRARY),
                    vmem_limit_bytes=vmem_limit,
                ),
            )(x2d)

        if ncores == 2:
            # Real per-TensorCore shard on v7x; fall back to plain "parallel"
            # if CORE_PARALLEL is rejected by the current toolchain.
            try:
                partials = run(pltpu.CORE_PARALLEL)
            except Exception:
                partials = run(pltpu.PARALLEL)
        else:
            partials = run(pltpu.ARBITRARY)

        total = total + jnp.sum(partials)

    if n_main < n:
        # <128-element remainder (or inputs with < sublane*128 elements).
        total = total + jnp.sum(x_flat[n_main:].astype(jnp.float32))

    # Sign and exact 1/n applied in the wrapper (no per-sign kernel variants).
    loss = jnp.float32(sign / n) * total
    return loss, {}


if __name__ == "__main__":
    key = jax.random.PRNGKey(0)

    # Input "sigmoid disparities": NCHW, batch=2, channels=4, spatial=16x16.
    x = jax.nn.sigmoid(jax.random.normal(key, (2, 4, 16, 16), dtype=jnp.float32))

    loss, loss_dict = occ_reg(x, invert=False)
    loss = jax.block_until_ready(loss)
    loss_inv, _ = occ_reg(x, invert=True)
    loss_inv = jax.block_until_ready(loss_inv)

    ref = jnp.mean(x)
    assert jnp.allclose(loss, ref, rtol=1e-5, atol=1e-6)
    assert jnp.allclose(loss_inv, -ref, rtol=1e-5, atol=1e-6)
    assert loss_dict == {}

    # Odd shape: exercises the in-kernel tail mask and the wrapper remainder.
    x2 = jax.nn.sigmoid(
        jax.random.normal(jax.random.PRNGKey(1), (2, 3, 33, 33), dtype=jnp.float32))
    loss2, _ = occ_reg(x2)
    loss2 = jax.block_until_ready(loss2)
    assert jnp.allclose(loss2, jnp.mean(x2), rtol=1e-5, atol=1e-6)

    # Larger input: multiple tiles per core, partial tail block, and (on v7x)
    # the dual-TensorCore split with an over-assigned clamped block.
    x3 = jax.nn.sigmoid(
        jax.random.normal(jax.random.PRNGKey(2), (4, 8, 512, 320), dtype=jnp.float32))
    loss3, _ = occ_reg(x3)
    loss3 = jax.block_until_ready(loss3)
    assert jnp.allclose(loss3, jnp.mean(x3), rtol=1e-4, atol=1e-6)

    # bf16 input: exercises dtype-aware (16,128) sublane alignment + in-kernel upcast.
    x4 = jax.nn.sigmoid(
        jax.random.normal(jax.random.PRNGKey(3), (2, 4, 32, 64), dtype=jnp.float32)
    ).astype(jnp.bfloat16)
    loss4, _ = occ_reg(x4)
    loss4 = jax.block_until_ready(loss4)
    assert jnp.allclose(loss4, jnp.mean(x4.astype(jnp.float32)), rtol=1e-4, atol=1e-6)

    print("KERNEL_OK")
</pallas_src>

<mosaic_0001>
module attributes {stable_mosaic.version = 11 : i64} {
  func.func @_sum_kernel(%arg0: i32, %arg1: i32, %arg2: memref<16x128xf32, #tpu.memory_space<vmem>>, %arg3: memref<1x16x128xf32, #tpu.memory_space<vmem>>) attributes {dimension_semantics = [#tpu.dimension_semantics<arbitrary>, #tpu.dimension_semantics<arbitrary>], iteration_bounds = array<i64: 1, 1>, scalar_prefetch = 0 : i64, scratch_operands = 0 : i64, tpu.core_type = #tpu.core_type<tc>, window_params = [{transform_indices = @transform_0, window_bounds = array<i64: 16, 128>}, {transform_indices = @transform_1, window_bounds = array<i64: 1, 16, 128>}]} {
    %c0_i32 = arith.constant 0 : i32
    %0 = arith.cmpi eq, %arg1, %c0_i32 : i32
    %1 = arith.extui %0 : i1 to i32
    %c0_i32_0 = arith.constant 0 : i32
    %2 = arith.cmpi ne, %1, %c0_i32_0 : i32
    scf.if %2 {
      %cst_8 = arith.constant 0.000000e+00 : f32
      %12 = vector.broadcast %cst_8 : f32 to vector<1x16x128xf32>
      %c0_9 = arith.constant 0 : index
      %c0_10 = arith.constant 0 : index
      %c0_11 = arith.constant 0 : index
      %13 = vector.load %arg3[%c0_9, %c0_10, %c0_11] : memref<1x16x128xf32, #tpu.memory_space<vmem>>, vector<1x16x128xf32>
      tpu.vector_store %arg3[%c0_9, %c0_10, %c0_11], %12 {strides = array<i32>} : memref<1x16x128xf32, #tpu.memory_space<vmem>>, vector<1x16x128xf32>,
    } else {
    }
    %c0 = arith.constant 0 : index
    %c0_1 = arith.constant 0 : index
    %3 = vector.load %arg2[%c0, %c0_1] : memref<16x128xf32, #tpu.memory_space<vmem>>, vector<16x128xf32>
    %c0_2 = arith.constant 0 : index
    %c0_3 = arith.constant 0 : index
    %c0_4 = arith.constant 0 : index
    %4 = vector.load %arg3[%c0_2, %c0_3, %c0_4] : memref<1x16x128xf32, #tpu.memory_space<vmem>>, vector<1x16x128xf32>
    %5 = vector.shape_cast %4 : vector<1x16x128xf32> to vector<16x128xf32>
    %6 = vector.shape_cast %3 : vector<16x128xf32> to vector<1x16x128xf32>
    %cst = arith.constant dense<0.000000e+00> : vector<16x128xf32>
    %7 = vector.multi_reduction <add>, %6, %cst [0] : vector<1x16x128xf32> to vector<16x128xf32>
    %8 = arith.addf %5, %7 : vector<16x128xf32>
    %c0_5 = arith.constant 0 : index
    %c0_6 = arith.constant 0 : index
    %c0_7 = arith.constant 0 : index
    %9 = vector.load %arg3[%c0_5, %c0_6, %c0_7] : memref<1x16x128xf32, #tpu.memory_space<vmem>>, vector<1x16x128xf32>
    %10 = vector.shape_cast %9 : vector<1x16x128xf32> to vector<16x128xf32>
    %11 = vector.shape_cast %8 : vector<16x128xf32> to vector<1x16x128xf32>
    tpu.vector_store %arg3[%c0_5, %c0_6, %c0_7], %11 {strides = array<i32>} : memref<1x16x128xf32, #tpu.memory_space<vmem>>, vector<1x16x128xf32>,
    return
  }
  func.func @transform_0(%arg0: i32, %arg1: i32) -> (i32, i32) {
    %c1_i32 = arith.constant 1 : i32
    %0 = arith.muli %arg0, %c1_i32 : i32
    %1 = arith.addi %0, %arg1 : i32
    %c0_i32 = arith.constant 0 : i32
    %c0_i32_0 = arith.constant 0 : i32
    return %1, %c0_i32 : i32, i32
  }
  func.func @transform_1(%arg0: i32, %arg1: i32) -> (i32, i32, i32) {
    %c0_i32 = arith.constant 0 : i32
    %c0_i32_0 = arith.constant 0 : i32
    %c0_i32_1 = arith.constant 0 : i32
    return %arg0, %c0_i32, %c0_i32_0 : i32, i32, i32
  }
}

</mosaic_0001>

<llo_original>
// kernel: tpu_custom_call.1
$region0: #{tpu_custom_call.1}
  #allocation0 [shape = 'u32[]', space=smem, size = 0x4, offset = 0x4, fixed_abs, tag = 'smem constant byte address 0x4 - core index']
  #allocation1 [shape = 'u32[72,128]{1,0:T(1,128)}', space=vmem, size = 0x9000, scoped, tag = 'internal scratch']
  %s0 = inlined_call_operand.hbm [shape: f32[16,128], index: 0, kind: input, shape index: {}]
  %s1 = inlined_call_operand.hbm [shape: f32[1,16,128], index: 1, kind: output, shape index: {}]
  %s2 = sld [smem:[#allocation0]]
  $region22: #{tpu_custom_call.1} parent=0
    _
  %s4 = ssub.s32 1, %s2
  %s5 = scalar_select 0, %s4, %s2
  $region1: #{tpu_custom_call.1} parent=0
    #allocation2 [shape = 'u8[8192]{0}', space=vmem, size = 0x2000, scoped, tag = 'input window, operand 0, single buffered']
    #allocation3 [shape = 's32[1]{0}', space=sflag, size = 0x4, scoped, tag = 'scoped memory for tpu_custom_call.1']
    #allocation4 [shape = 's32[1]{0}', space=sflag, size = 0x4, scoped, tag = 'scoped memory for tpu_custom_call.1']
    #allocation5 [shape = 'u8[8192]{0}', space=vmem, size = 0x2000, scoped, tag = 'output window, operand 0, single buffered']
    %6 = vsyncpa [#allocation3], 0
    %7 = vsyncpa [#allocation4], 0
    // Predicated region
    $region2: #{tpu_custom_call.1} parent=1 // pred_check
      _
    $region3: #{tpu_custom_call.1} parent=1 // pred_check_branch
      %9 = sbr.rel (0) target = $region5
    $region4: #{tpu_custom_call.1} parent=1 // pred_region
      %s10 = sadd.s32 0, 0
      %s11 = smul.u32 2, %s10
      %13 = vsyncadd [#allocation3], 0
      %s14 = smul.addr %s11, 8
      %s15 = scalar_lea.hbm %s0, %s14
      %s16 = sshll.u32 %s15, 4
      %s17 = int_to_ptr.hbm [resolvable:$true] %s16
      %s18 = sshll.u32 [#allocation2], 4
      %s19 = int_to_ptr.vmem [resolvable:$true] %s18
      %24 = dma.hbm_to_vmem [thread:$0]  %s17, 256, %s19, [#allocation3], 128, 128, 8
    $region5: #{tpu_custom_call.1} parent=1 // pred_fallthru
      _
    // Predicated region
    $region6: #{tpu_custom_call.1} parent=1 // pred_check
      _
    $region7: #{tpu_custom_call.1} parent=1 // pred_check_branch
      %26 = sbr.rel (0) target = $region9
    $region8: #{tpu_custom_call.1} parent=1 // pred_region
      %28 = dma.done [#allocation3], 256
    $region9: #{tpu_custom_call.1} parent=1 // pred_fallthru
      _
    %s29 = sadd.s32 0, 0
    %s30 = smul.u32 2, %s29
    %p31 = scmp.eq.s32.totalorder 0, 0
    // Predicated region
    $region10: #{tpu_custom_call.1} parent=1 // pred_check
      %p32 = pneg %p31
    $region11: #{tpu_custom_call.1} parent=1 // pred_check_branch
      %34 = sbr.rel (%p32) target = $region13
    $region12: #{tpu_custom_call.1} parent=1 // pred_region
      %35 = vst [vmem:[#allocation5] sm:$0xff] 0.0
      %36 = vst [vmem:[#allocation5 + $0x8] sm:$0xff] 0.0
    $region13: #{tpu_custom_call.1} parent=1 // pred_fallthru
      _
    %v37 = vld [vmem:[#allocation2] sm:$0xff]
    %v38 = vld [vmem:[#allocation2 + $0x8] sm:$0xff]
    %v39 = vld [vmem:[#allocation5] sm:$0xff]
    %v40 = vld [vmem:[#allocation5 + $0x8] sm:$0xff]
    %v41 = vadd.f32 %v37, 0.0
    %v42 = vadd.f32 %v38, 0.0
    %v43 = vadd.f32 %v39, %v41
    %v44 = vadd.f32 %v40, %v42
    %45 = vst [vmem:[#allocation5] sm:$0xff] %v43
    %46 = vst [vmem:[#allocation5 + $0x8] sm:$0xff] %v44
    // Predicated region
    $region14: #{tpu_custom_call.1} parent=1 // pred_check
      _
    $region15: #{tpu_custom_call.1} parent=1 // pred_check_branch
      %48 = sbr.rel (0) target = $region17
    $region16: #{tpu_custom_call.1} parent=1 // pred_region
      %50 = vsyncadd [#allocation4], 0
      %s51 = sshll.u32 [#allocation5], 4
      %s52 = int_to_ptr.vmem [resolvable:$true] %s51
      %s53 = sshll.u32 %s1, 4
      %s54 = int_to_ptr.hbm [resolvable:$true] %s53
      %59 = dma.vmem_to_hbm [thread:$0]  %s52, 256, %s54, [#allocation4], 128, 128, 8
    $region17: #{tpu_custom_call.1} parent=1 // pred_fallthru
      _
    // Predicated region
    $region18: #{tpu_custom_call.1} parent=1 // pred_check
      _
    $region19: #{tpu_custom_call.1} parent=1 // pred_check_branch
      %61 = sbr.rel (0) target = $region21
    $region20: #{tpu_custom_call.1} parent=1 // pred_region
      %63 = dma.done [#allocation4], 256
    $region21: #{tpu_custom_call.1} parent=1 // pred_fallthru
      _
    %64 = vsyncpa [#allocation3], 1
    %65 = vsyncpa [#allocation4], 1

</llo_original>
